<compile_context>
chip_gen: v5e
topology: v5e:2x2
jax: 0.10.0
libtpu: 0.0.40
codegen_flags: <defaults>
</compile_context>

<pallas_src>
import functools

import jax
import jax.numpy as jnp
from jax.experimental import pallas as pl
from jax.experimental.pallas import tpu as pltpu

BN_EPS = 1e-5
LEAKY_SLOPE = 0.01           # nn.LeakyReLU() default negative_slope
COMPUTE_DTYPE = jnp.bfloat16  # MXU operand dtype (f32 accumulation)


def _round_up(a, b):
    return (a + b - 1) // b * b


def _group_mlp_kernel(x_ref, w1_ref, b1_ref, w2_ref, b2_ref, o_ref, acc_ref):
    """One (batch-tile, M-chunk) step of the fused conv1+BN+LeakyReLU+conv2."""
    j = pl.program_id(1)                       # M-chunk (reduction) index

    @pl.when(j == 0)
    def _():
        acc_ref[...] = jnp.zeros_like(acc_ref)

    # conv1 (BN already folded into w1/b1): bf16 MXU matmul, f32 accumulation.
    h = jnp.dot(x_ref[...], w1_ref[...], preferred_element_type=jnp.float32)
    h = h + b1_ref[...]                        # (bn, bm) + (1, bm), f32

    # LeakyReLU (f32 VPU).
    h = jnp.where(h >= 0, h, LEAKY_SLOPE * h)

    # Dropout is identity in eval mode.
    # conv2 partial sum over this M chunk (bf16 MXU, f32 accumulate).
    acc_ref[...] += jnp.dot(h.astype(w2_ref.dtype), w2_ref[...],
                            preferred_element_type=jnp.float32)

    @pl.when(j == pl.num_programs(1) - 1)
    def _():
        o_ref[...] = (acc_ref[...] + b2_ref[...]).astype(o_ref.dtype)


@functools.partial(jax.jit, static_argnames=("block_n", "block_m"))
def group_mlp_1lay_forward(x, w1, b1, running_mean, running_var, w2, b2,
                           *, block_n=256, block_m=512):
    """x: (N, C_in).  w1: (C_in, M), w2: (M, C_out).  Returns (N, C_out) f32."""
    N, C_in = x.shape
    M = w1.shape[1]
    C_out = w2.shape[1]

    # ---- Fold eval-mode BatchNorm1d(affine=False) into conv1 (f32 math). ----
    inv_std = jax.lax.rsqrt(running_var.astype(jnp.float32) + BN_EPS)  # (M,)
    w1_f = w1.astype(jnp.float32) * inv_std[None, :]
    b1_f = (b1.astype(jnp.float32) - running_mean.astype(jnp.float32)) * inv_std

    # ---- Lane-dense padding of hidden (M) and output (C_out) axes. ----------
    bm = min(_round_up(block_m, 128), _round_up(M, 128))   # M-chunk size
    M_p = _round_up(M, bm)                                  # multiple of bm
    C_out_p = _round_up(C_out, 128)

    w1_p = jnp.pad(w1_f, ((0, 0), (0, M_p - M)))
    b1_p = jnp.pad(b1_f, ((0, M_p - M),)).reshape(1, M_p)
    w2_p = jnp.pad(w2.astype(jnp.float32),
                   ((0, M_p - M), (0, C_out_p - C_out)))
    b2_p = jnp.pad(b2.astype(jnp.float32),
                   ((0, C_out_p - C_out),)).reshape(1, C_out_p)

    # bf16 MXU operands (weights downcast only *after* the f32 BN fold).
    # If the caller already supplies bf16 activations this cast is free.
    x_c = x.astype(COMPUTE_DTYPE)
    w1_c = w1_p.astype(COMPUTE_DTYPE)
    w2_c = w2_p.astype(COMPUTE_DTYPE)

    # ---- Grid / tiling. ------------------------------------------------------
    bn = max(8, min(_round_up(block_n, 8), _round_up(N, 8)))
    grid = (pl.cdiv(N, bn), M_p // bm)

    # VMEM footprint (double-buffered inputs/outputs + scratch + intermediate).
    est = (2 * C_in * bm * 2            # w1 tiles (bf16)
           + 2 * bm * C_out_p * 2       # w2 tiles (bf16)
           + 2 * (bm + C_out_p) * 4     # biases (f32)
           + 2 * bn * C_in * 2          # x tiles (bf16)
           + 2 * bn * C_out_p * 4       # out tiles (f32)
           + bn * C_out_p * 4           # accumulator scratch
           + bn * bm * 4)               # h intermediate
    vmem_limit = int(min(max(2 * est + (4 << 20), 32 << 20), 64 << 20))

    out_p = pl.pallas_call(
        _group_mlp_kernel,
        out_shape=jax.ShapeDtypeStruct((N, C_out_p), jnp.float32),
        grid_spec=pltpu.PrefetchScalarGridSpec(
            num_scalar_prefetch=0,
            grid=grid,
            in_specs=[
                pl.BlockSpec((bn, C_in), lambda i, j: (i, 0)),      # x tile
                pl.BlockSpec((C_in, bm), lambda i, j: (0, j)),      # W1 chunk
                pl.BlockSpec((1, bm), lambda i, j: (0, j)),         # b1 chunk
                pl.BlockSpec((bm, C_out_p), lambda i, j: (j, 0)),   # W2 chunk
                pl.BlockSpec((1, C_out_p), lambda i, j: (0, 0)),    # b2
            ],
            out_specs=pl.BlockSpec((bn, C_out_p), lambda i, j: (i, 0)),
            scratch_shapes=[pltpu.VMEM((bn, C_out_p), jnp.float32)],
        ),
        compiler_params=pltpu.CompilerParams(
            dimension_semantics=("parallel", "arbitrary"),
            vmem_limit_bytes=vmem_limit),
    )(x_c, w1_c, b1_p, w2_c, b2_p)

    return out_p[:, :C_out] if C_out_p != C_out else out_p


def init_params(key, in_features, mid_features, out_features):
    """Deterministic synthetic parameters (PyTorch-like uniform init)."""
    k1, k2, k3, k4 = jax.random.split(key, 4)
    # conv1.weight: torch shape (mid, in, 1) -> stored transposed (in, mid)
    bound1 = 1.0 / (in_features ** 0.5)
    w1 = jax.random.uniform(k1, (in_features, mid_features), jnp.float32,
                            -bound1, bound1)
    b1 = jax.random.uniform(k2, (mid_features,), jnp.float32, -bound1, bound1)
    # conv2.weight: torch shape (out, mid, 1) -> stored transposed (mid, out)
    bound2 = 1.0 / (mid_features ** 0.5)
    w2 = jax.random.uniform(k3, (mid_features, out_features), jnp.float32,
                            -bound2, bound2)
    b2 = jax.random.uniform(k4, (out_features,), jnp.float32, -bound2, bound2)
    # BatchNorm1d running stats at their __init__ values.
    running_mean = jnp.zeros((mid_features,), jnp.float32)
    running_var = jnp.ones((mid_features,), jnp.float32)
    return w1, b1, running_mean, running_var, w2, b2


if __name__ == "__main__":
    N = 8            # batch (toy test; realistic N uses block_n=256 tiles)
    in_features = 16
    mid_features = 32
    out_features = 16

    key = jax.random.PRNGKey(0)
    kx, kp = jax.random.split(key)
    x = jax.random.normal(kx, (N, in_features), jnp.float32)
    params = init_params(kp, in_features, mid_features, out_features)

    out = group_mlp_1lay_forward(x, *params)
    out = jax.block_until_ready(out)

    # Sanity check against plain-JAX f32 reference of the same math
    # (loose tolerance: the kernel runs the matmuls in bf16 with f32 accum).
    w1, b1, rm, rv, w2, b2 = params
    h = x @ w1 + b1
    h = (h - rm) / jnp.sqrt(rv + BN_EPS)
    h = jnp.where(h >= 0, h, LEAKY_SLOPE * h)
    ref = h @ w2 + b2
    assert out.shape == (N, out_features)
    assert jnp.max(jnp.abs(out - ref)) < 5e-2

    print("KERNEL_OK")
</pallas_src>

<mosaic_0001>
module attributes {stable_mosaic.version = 11 : i64} {
  func.func @_group_mlp_kernel(%arg0: i32, %arg1: i32, %arg2: memref<8x16xbf16, #tpu.memory_space<vmem>>, %arg3: memref<16x128xbf16, #tpu.memory_space<vmem>>, %arg4: memref<1x128xf32, #tpu.memory_space<vmem>>, %arg5: memref<128x128xbf16, #tpu.memory_space<vmem>>, %arg6: memref<1x128xf32, #tpu.memory_space<vmem>>, %arg7: memref<8x128xf32, #tpu.memory_space<vmem>>, %arg8: memref<8x128xf32, #tpu.memory_space<vmem>>) attributes {dimension_semantics = [#tpu.dimension_semantics<parallel>, #tpu.dimension_semantics<arbitrary>], iteration_bounds = array<i64: 1, 1>, scalar_prefetch = 0 : i64, scratch_operands = 1 : i64, tpu.core_type = #tpu.core_type<tc>, window_params = [{transform_indices = @transform_0, window_bounds = array<i64: 8, 16>}, {transform_indices = @transform_1, window_bounds = array<i64: 16, 128>}, {transform_indices = @transform_2, window_bounds = array<i64: 1, 128>}, {transform_indices = @transform_3, window_bounds = array<i64: 128, 128>}, {pipeline_mode = #tpu.pipeline_mode<synchronous>, transform_indices = @transform_4, window_bounds = array<i64: 1, 128>}, {transform_indices = @transform_5, window_bounds = array<i64: 8, 128>}]} {
    %c0_i32 = arith.constant 0 : i32
    %0 = arith.cmpi eq, %arg1, %c0_i32 : i32
    %1 = arith.extui %0 : i1 to i32
    %c0_i32_0 = arith.constant 0 : i32
    %2 = arith.cmpi ne, %1, %c0_i32_0 : i32
    scf.if %2 {
      %cst_17 = arith.constant 0.000000e+00 : f32
      %23 = vector.broadcast %cst_17 : f32 to vector<8x128xf32>
      %c0_18 = arith.constant 0 : index
      %c0_19 = arith.constant 0 : index
      %24 = vector.load %arg8[%c0_18, %c0_19] : memref<8x128xf32, #tpu.memory_space<vmem>>, vector<8x128xf32>
      tpu.vector_store %arg8[%c0_18, %c0_19], %23 {strides = array<i32>} : memref<8x128xf32, #tpu.memory_space<vmem>>, vector<8x128xf32>,
    } else {
    }
    %c0 = arith.constant 0 : index
    %c0_1 = arith.constant 0 : index
    %3 = vector.load %arg2[%c0, %c0_1] : memref<8x16xbf16, #tpu.memory_space<vmem>>, vector<8x16xbf16>
    %c0_2 = arith.constant 0 : index
    %c0_3 = arith.constant 0 : index
    %4 = vector.load %arg3[%c0_2, %c0_3] : memref<16x128xbf16, #tpu.memory_space<vmem>>, vector<16x128xbf16>
    %cst = arith.constant dense<0.000000e+00> : vector<8x128xf32>
    %5 = tpu.matmul %3, %4, %cst {dimension_numbers = #tpu.dot_dimension_numbers<[1], [0], [0], [1], [0, 0, 1, 1], [], []>} : vector<8x16xbf16>, vector<16x128xbf16>, vector<8x128xf32> -> vector<8x128xf32>
    %c0_4 = arith.constant 0 : index
    %c0_5 = arith.constant 0 : index
    %6 = vector.load %arg4[%c0_4, %c0_5] : memref<1x128xf32, #tpu.memory_space<vmem>>, vector<1x128xf32>
    %7 = vector.broadcast %6 : vector<1x128xf32> to vector<8x128xf32>
    %8 = arith.addf %5, %7 : vector<8x128xf32>
    %cst_6 = arith.constant 0.000000e+00 : f32
    %9 = vector.broadcast %cst_6 : f32 to vector<8x128xf32>
    %10 = arith.cmpf oge, %8, %9 : vector<8x128xf32>
    %cst_7 = arith.constant 0.00999999977 : f32
    %11 = vector.broadcast %cst_7 : f32 to vector<8x128xf32>
    %12 = arith.mulf %11, %8 : vector<8x128xf32>
    %13 = arith.select %10, %8, %12 : vector<8x128xi1>, vector<8x128xf32>
    %c0_8 = arith.constant 0 : index
    %c0_9 = arith.constant 0 : index
    %14 = vector.load %arg8[%c0_8, %c0_9] : memref<8x128xf32, #tpu.memory_space<vmem>>, vector<8x128xf32>
    %15 = arith.truncf %13 : vector<8x128xf32> to vector<8x128xbf16>
    %c0_10 = arith.constant 0 : index
    %c0_11 = arith.constant 0 : index
    %16 = vector.load %arg5[%c0_10, %c0_11] : memref<128x128xbf16, #tpu.memory_space<vmem>>, vector<128x128xbf16>
    %cst_12 = arith.constant dense<0.000000e+00> : vector<8x128xf32>
    %17 = tpu.matmul %15, %16, %cst_12 {dimension_numbers = #tpu.dot_dimension_numbers<[1], [0], [0], [1], [0, 0, 1, 1], [], []>} : vector<8x128xbf16>, vector<128x128xbf16>, vector<8x128xf32> -> vector<8x128xf32>
    %18 = arith.addf %14, %17 : vector<8x128xf32>
    %c0_13 = arith.constant 0 : index
    %c0_14 = arith.constant 0 : index
    %19 = vector.load %arg8[%c0_13, %c0_14] : memref<8x128xf32, #tpu.memory_space<vmem>>, vector<8x128xf32>
    tpu.vector_store %arg8[%c0_13, %c0_14], %18 {strides = array<i32>} : memref<8x128xf32, #tpu.memory_space<vmem>>, vector<8x128xf32>,
    %c0_i32_15 = arith.constant 0 : i32
    %20 = arith.cmpi eq, %arg1, %c0_i32_15 : i32
    %21 = arith.extui %20 : i1 to i32
    %c0_i32_16 = arith.constant 0 : i32
    %22 = arith.cmpi ne, %21, %c0_i32_16 : i32
    scf.if %22 {
      %c0_17 = arith.constant 0 : index
      %c0_18 = arith.constant 0 : index
      %23 = vector.load %arg8[%c0_17, %c0_18] : memref<8x128xf32, #tpu.memory_space<vmem>>, vector<8x128xf32>
      %c0_19 = arith.constant 0 : index
      %c0_20 = arith.constant 0 : index
      %24 = vector.load %arg6[%c0_19, %c0_20] : memref<1x128xf32, #tpu.memory_space<vmem>>, vector<1x128xf32>
      %25 = vector.broadcast %24 : vector<1x128xf32> to vector<8x128xf32>
      %26 = arith.addf %23, %25 : vector<8x128xf32>
      %c0_21 = arith.constant 0 : index
      %c0_22 = arith.constant 0 : index
      %27 = vector.load %arg7[%c0_21, %c0_22] : memref<8x128xf32, #tpu.memory_space<vmem>>, vector<8x128xf32>
      tpu.vector_store %arg7[%c0_21, %c0_22], %26 {strides = array<i32>} : memref<8x128xf32, #tpu.memory_space<vmem>>, vector<8x128xf32>,
    } else {
    }
    return
  }
  func.func @transform_0(%arg0: i32, %arg1: i32) -> (i32, i32) {
    %c0_i32 = arith.constant 0 : i32
    %c0_i32_0 = arith.constant 0 : i32
    return %arg0, %c0_i32 : i32, i32
  }
  func.func @transform_1(%arg0: i32, %arg1: i32) -> (i32, i32) {
    %c0_i32 = arith.constant 0 : i32
    %c0_i32_0 = arith.constant 0 : i32
    return %c0_i32, %arg1 : i32, i32
  }
  func.func @transform_2(%arg0: i32, %arg1: i32) -> (i32, i32) {
    %c0_i32 = arith.constant 0 : i32
    %c0_i32_0 = arith.constant 0 : i32
    return %c0_i32, %arg1 : i32, i32
  }
  func.func @transform_3(%arg0: i32, %arg1: i32) -> (i32, i32) {
    %c0_i32 = arith.constant 0 : i32
    %c0_i32_0 = arith.constant 0 : i32
    return %arg1, %c0_i32 : i32, i32
  }
  func.func @transform_4(%arg0: i32, %arg1: i32) -> (i32, i32) {
    %c0_i32 = arith.constant 0 : i32
    %c0_i32_0 = arith.constant 0 : i32
    %c0_i32_1 = arith.constant 0 : i32
    return %c0_i32, %c0_i32_0 : i32, i32
  }
  func.func @transform_5(%arg0: i32, %arg1: i32) -> (i32, i32) {
    %c0_i32 = arith.constant 0 : i32
    %c0_i32_0 = arith.constant 0 : i32
    return %arg0, %c0_i32 : i32, i32
  }
}

</mosaic_0001>

<llo_original>
// kernel: group_mlp_1lay_forward.1
$region0: #{group_mlp_1lay_forward.1}
  #allocation0 [shape = 'u32[]', space=smem, size = 0x4, offset = 0x4, fixed_abs, tag = 'smem constant byte address 0x4 - core index']
  #allocation1 [shape = 'u32[72,128]{1,0:T(1,128)}', space=vmem, size = 0x9000, scoped, tag = 'internal scratch']
  #allocation2 [shape = 'f32[8,128]{1,0:T(8,128)}', space=vmem, size = 0x1000, scoped, tag = 'scratch operand']
  %s0 = inlined_call_operand.vmem [shape: bf16[8,16], index: 0, kind: input, shape index: {}]
  %s1 = inlined_call_operand.vmem [shape: bf16[16,128], index: 1, kind: input, shape index: {}]
  %s2 = inlined_call_operand.vmem [shape: f32[1,128], index: 2, kind: input, shape index: {}]
  %s3 = inlined_call_operand.vmem [shape: bf16[128,128], index: 3, kind: input, shape index: {}]
  %s4 = inlined_call_operand.vmem [shape: f32[1,128], index: 4, kind: input, shape index: {}]
  %s5 = inlined_call_operand.hbm [shape: f32[8,128], index: 5, kind: output, shape index: {}]
  %s6 = sld [smem:[#allocation0]]
  $region38: #{group_mlp_1lay_forward.1} parent=0
    _
  %s8 = ssub.s32 1, %s6
  %s9 = scalar_select 0, %s8, %s6
  $region1: #{group_mlp_1lay_forward.1} parent=0
    #allocation3 [shape = 'u8[4096]{0}', space=vmem, size = 0x1000, scoped, tag = 'output window, operand 0, single buffered']
    #allocation4 [shape = 's32[1]{0}', space=sflag, size = 0x4, scoped, tag = 'scoped memory for group_mlp_1lay_forward.1']
    %10 = vsyncpa [#allocation4], 0
    // Predicated region
    $region2: #{group_mlp_1lay_forward.1} parent=1 // pred_check
      _
    $region3: #{group_mlp_1lay_forward.1} parent=1 // pred_check_branch
      %12 = sbr.rel (0) target = $region5
    $region4: #{group_mlp_1lay_forward.1} parent=1 // pred_region
      _
    $region5: #{group_mlp_1lay_forward.1} parent=1 // pred_fallthru
      _
    // Predicated region
    $region6: #{group_mlp_1lay_forward.1} parent=1 // pred_check
      _
    $region7: #{group_mlp_1lay_forward.1} parent=1 // pred_check_branch
      %14 = sbr.rel (0) target = $region9
    $region8: #{group_mlp_1lay_forward.1} parent=1 // pred_region
      _
    $region9: #{group_mlp_1lay_forward.1} parent=1 // pred_fallthru
      _
    // Predicated region
    $region10: #{group_mlp_1lay_forward.1} parent=1 // pred_check
      _
    $region11: #{group_mlp_1lay_forward.1} parent=1 // pred_check_branch
      %16 = sbr.rel (0) target = $region13
    $region12: #{group_mlp_1lay_forward.1} parent=1 // pred_region
      _
    $region13: #{group_mlp_1lay_forward.1} parent=1 // pred_fallthru
      _
    // Predicated region
    $region14: #{group_mlp_1lay_forward.1} parent=1 // pred_check
      _
    $region15: #{group_mlp_1lay_forward.1} parent=1 // pred_check_branch
      %18 = sbr.rel (0) target = $region17
    $region16: #{group_mlp_1lay_forward.1} parent=1 // pred_region
      _
    $region17: #{group_mlp_1lay_forward.1} parent=1 // pred_fallthru
      _
    // Predicated region
    $region18: #{group_mlp_1lay_forward.1} parent=1 // pred_check
      _
    $region19: #{group_mlp_1lay_forward.1} parent=1 // pred_check_branch
      %20 = sbr.rel (0) target = $region21
    $region20: #{group_mlp_1lay_forward.1} parent=1 // pred_region
      _
    $region21: #{group_mlp_1lay_forward.1} parent=1 // pred_fallthru
      _
    %p22 = scmp.eq.s32.totalorder 0, 0
    // Predicated region
    $region22: #{group_mlp_1lay_forward.1} parent=1 // pred_check
      %p23 = pneg %p22
    $region23: #{group_mlp_1lay_forward.1} parent=1 // pred_check_branch
      %25 = sbr.rel (%p23) target = $region25
    $region24: #{group_mlp_1lay_forward.1} parent=1 // pred_region
      %26 = vst [vmem:[#allocation2] sm:$0xff] 0.0
    $region25: #{group_mlp_1lay_forward.1} parent=1 // pred_fallthru
      _
    %v27 = vld [vmem:[%s0] sm:$0xf]
    %v28 = vld [vmem:[%s1] sm:$0xf]
    %v29 = vld [vmem:[%s1 + $0x4] sm:$0xf]
    %v30 = vld [vmem:[%s2] sm:$0x1]
    %v32 = vperm.slane %v30, 0
    %v36 = vunpack.c.l.b16 %v28
    %v37 = vunpack.c.l.b16 %v29
    %v38 = vpack.c.b16 %v37, %v36
    %vm40 = vcmask 130048
    %v42 = vsel %vm40, %v27, 0
    %44 = vmatpush.bf16.msra.mxu0 0
    %45 = vmatpush.bf16.msra.mxu0 0
    %46 = vmatpush.bf16.msra.mxu0 0
    %47 = vmatpush.bf16.msra.mxu0 0
    %48 = vmatpush.bf16.msra.mxu0 0
    %49 = vmatpush.bf16.msra.mxu0 0
    %50 = vmatpush.bf16.msra.mxu0 0
    %51 = vmatpush.bf16.msra.mxu0 %v38
    %52 = vmatmul.bf16.gmra.mxu0 %v42
    %v53 = vpop.f32.mrf.mxu0
    %v54 = vadd.f32 %v32, %v53
    %v55 = vpop.f32.mrf.mxu0
    %56 = vdwg.mxu0
    %vm57 = vcmp.ge.f32.partialorder %v54, 0.0
    %v58 = vmul.f32 %v54, 0.01
    %v59 = vsel %vm57, %v54, %v58
    %v60 = vld [vmem:[#allocation2] sm:$0xff]
    %v61 = vpack.c.bf16 %v59, %v59
    %v62 = vld [vmem:[%s3] sm:$0xf]
    %v63 = vld [vmem:[%s3 + $0x4] sm:$0xf]
    %v64 = vld [vmem:[%s3 + $0x8] sm:$0xf]
    %v65 = vld [vmem:[%s3 + $0xc] sm:$0xf]
    %v66 = vld [vmem:[%s3 + $0x10] sm:$0xf]
    %v67 = vld [vmem:[%s3 + $0x14] sm:$0xf]
    %v68 = vld [vmem:[%s3 + $0x18] sm:$0xf]
    %v69 = vld [vmem:[%s3 + $0x1c] sm:$0xf]
    %v70 = vld [vmem:[%s3 + $0x20] sm:$0xf]
    %v71 = vld [vmem:[%s3 + $0x24] sm:$0xf]
    %v72 = vld [vmem:[%s3 + $0x28] sm:$0xf]
    %v73 = vld [vmem:[%s3 + $0x2c] sm:$0xf]
    %v74 = vld [vmem:[%s3 + $0x30] sm:$0xf]
    %v75 = vld [vmem:[%s3 + $0x34] sm:$0xf]
    %v76 = vld [vmem:[%s3 + $0x38] sm:$0xf]
    %v77 = vld [vmem:[%s3 + $0x3c] sm:$0xf]
    %v94 = vunpack.c.l.b16 %v62
    %v95 = vunpack.c.l.b16 %v63
    %v96 = vunpack.c.l.b16 %v64
    %v97 = vunpack.c.l.b16 %v65
    %v98 = vunpack.c.l.b16 %v66
    %v99 = vunpack.c.l.b16 %v67
    %v100 = vunpack.c.l.b16 %v68
    %v101 = vunpack.c.l.b16 %v69
    %v102 = vunpack.c.l.b16 %v70
    %v103 = vunpack.c.l.b16 %v71
    %v104 = vunpack.c.l.b16 %v72
    %v105 = vunpack.c.l.b16 %v73
    %v106 = vunpack.c.l.b16 %v74
    %v107 = vunpack.c.l.b16 %v75
    %v108 = vunpack.c.l.b16 %v76
    %v109 = vunpack.c.l.b16 %v77
    %v110 = vpack.c.b16 %v95, %v94
    %v111 = vpack.c.b16 %v97, %v96
    %v112 = vpack.c.b16 %v99, %v98
    %v113 = vpack.c.b16 %v101, %v100
    %v114 = vpack.c.b16 %v103, %v102
    %v115 = vpack.c.b16 %v105, %v104
    %v116 = vpack.c.b16 %v107, %v106
    %v117 = vpack.c.b16 %v109, %v108
    %126 = vmatpush.bf16.msra.mxu0 %v117
    %127 = vmatpush.bf16.msra.mxu0 %v116
    %128 = vmatpush.bf16.msra.mxu0 %v115
    %129 = vmatpush.bf16.msra.mxu0 %v114
    %130 = vmatpush.bf16.msra.mxu0 %v113
    %131 = vmatpush.bf16.msra.mxu0 %v112
    %132 = vmatpush.bf16.msra.mxu0 %v111
    %133 = vmatpush.bf16.msra.mxu0 %v110
    %134 = vmatmul.bf16.gmra.mxu0 %v61
    %v135 = vpop.f32.mrf.mxu0
    %v136 = vadd.f32 0.0, %v135
    %v137 = vpop.f32.mrf.mxu0
    %138 = vdwg.mxu0
    %v139 = vadd.f32 %v60, %v136
    %140 = vst [vmem:[#allocation2] sm:$0xff] %v139
    // Predicated region
    $region26: #{group_mlp_1lay_forward.1} parent=1 // pred_check
      %p141 = pneg %p22
    $region27: #{group_mlp_1lay_forward.1} parent=1 // pred_check_branch
      %143 = sbr.rel (%p141) target = $region29
    $region28: #{group_mlp_1lay_forward.1} parent=1 // pred_region
      %v144 = vld [vmem:[#allocation2] sm:$0xff]
      %v145 = vld [vmem:[%s4] sm:$0x1]
      %v147 = vperm.slane %v145, 0
      %v149 = vadd.f32 %v144, %v147
      %150 = vst [vmem:[#allocation3] sm:$0xff] %v149
    $region29: #{group_mlp_1lay_forward.1} parent=1 // pred_fallthru
      _
    // Predicated region
    $region30: #{group_mlp_1lay_forward.1} parent=1 // pred_check
      _
    $region31: #{group_mlp_1lay_forward.1} parent=1 // pred_check_branch
      %152 = sbr.rel (0) target = $region33
    $region32: #{group_mlp_1lay_forward.1} parent=1 // pred_region
      %154 = vsyncadd [#allocation4], 0
      %s156 = sshll.u32 [#allocation3], 4
      %s157 = int_to_ptr.vmem [resolvable:$true] %s156
      %s158 = sshll.u32 %s5, 4
      %s159 = int_to_ptr.hbm [resolvable:$true] %s158
      %161 = dma.vmem_to_hbm [thread:$0]  %s157, 128, %s159, [#allocation4]
    $region33: #{group_mlp_1lay_forward.1} parent=1 // pred_fallthru
      _
    // Predicated region
    $region34: #{group_mlp_1lay_forward.1} parent=1 // pred_check
      _
    $region35: #{group_mlp_1lay_forward.1} parent=1 // pred_check_branch
      %163 = sbr.rel (0) target = $region37
    $region36: #{group_mlp_1lay_forward.1} parent=1 // pred_region
      %165 = dma.done [#allocation4], 128
    $region37: #{group_mlp_1lay_forward.1} parent=1 // pred_fallthru
      _
    %166 = vsyncpa [#allocation4], 1

</llo_original>
